<compile_context>
chip_gen: v6e
topology: v6e:2x2x1
jax: 0.10.0
libtpu: 0.0.40
codegen_flags: <defaults>
</compile_context>

<pallas_src>
import math
from functools import partial

import jax
import jax.numpy as jnp
from jax.experimental import pallas as pl
from jax.experimental.pallas import tpu as pltpu


# ------------------------------ kernel ------------------------------------ #
def affine_kernel(x_ref, w_ref, b_ref, o_ref):
    # x: (TB, D) VMEM tile, w: (D, 1) VMEM-resident, b: (1, 1) f32 in SMEM.
    y = jnp.dot(x_ref[...], w_ref[...], preferred_element_type=jnp.float32)
    o_ref[...] = (y + b_ref[0, 0]).astype(o_ref.dtype)


# ------------------------------ helpers ----------------------------------- #
def _round_up(n, m):
    return ((n + m - 1) // m) * m


def _pick_block_b(B, max_block=1024):
    """Pick the batch tile: target 512-1024 rows (HBM roofline), keep >=2 grid
    steps when possible (feeds both v7x TensorCores), rows a multiple of 8."""
    if B <= max_block and B % 8 != 0:
        return B                                   # ragged small batch: 1 full block
    target = min(max_block, _round_up(pl.cdiv(B, 2), 8))
    return max(8, min(target, _round_up(B, 8)))


def fold_params(params):
    """Collapse the activation-free MLP into (W_eff, b_eff), in f32."""
    (w_eff, b_eff) = params[0]
    for (w, b) in params[1:]:
        b_eff = b_eff @ w + b
        w_eff = w_eff @ w
    return w_eff, b_eff  # (in_features, 1), (1, 1)


# ------------------------------ wrapper ------------------------------------ #
def _affine_pallas(x, w_eff, b_eff, *, max_block_b=1024):
    B, D = x.shape
    block_b = _pick_block_b(B, max_block_b)
    grid = (pl.cdiv(B, block_b),)

    cost = pl.CostEstimate(
        flops=2 * B * D,
        transcendentals=0,
        bytes_accessed=B * D * x.dtype.itemsize
        + D * w_eff.dtype.itemsize
        + B * 4,
    )

    return pl.pallas_call(
        affine_kernel,
        out_shape=jax.ShapeDtypeStruct((B, 1), jnp.float32),
        grid=grid,
        in_specs=[
            # Activation tile: streamed / double-buffered per grid step.
            pl.BlockSpec((block_b, D), lambda i: (i, 0)),
            # Folded weight column: constant index_map -> fetched once,
            # stays resident in VMEM across the whole grid.
            pl.BlockSpec((D, 1), lambda i: (0, 0)),
            # Folded bias scalar lives in SMEM (no padded VMEM tile).
            pl.BlockSpec(memory_space=pltpu.MemorySpace.SMEM),
        ],
        out_specs=pl.BlockSpec((block_b, 1), lambda i: (i, 0)),
        compiler_params=pltpu.CompilerParams(
            dimension_semantics=("parallel",),
        ),
        cost_estimate=cost,
    )(x, w_eff, b_eff)


def make_mlp_forward(params, *, stream_dtype=jnp.float32, max_block_b=1024):
    """Fold the 5 affine layers ONCE and return a jitted forward(x) closure."""
    w_eff, b_eff = fold_params(params)          # f32 fold at setup, not per call
    w_eff = jnp.asarray(w_eff, stream_dtype)
    b_eff = jnp.asarray(b_eff, jnp.float32)     # bias add stays f32

    @jax.jit
    def forward(x):
        return _affine_pallas(
            x.astype(stream_dtype), w_eff, b_eff, max_block_b=max_block_b
        )

    return forward


# ------------------------------ init / reference --------------------------- #
def init_params(key, input_size):
    """nn.Linear default init (uniform +-1/sqrt(fan_in)), (in, out) layout."""
    dims = [input_size, 1024, 128, 64, 16, 1]
    params = []
    for i in range(len(dims) - 1):
        fan_in, fan_out = dims[i], dims[i + 1]
        key, kw, kb = jax.random.split(key, 3)
        bound = 1.0 / math.sqrt(fan_in)
        w = jax.random.uniform(kw, (fan_in, fan_out), jnp.float32, -bound, bound)
        b = jax.random.uniform(kb, (1, fan_out), jnp.float32, -bound, bound)
        params.append((w, b))
    return params


def mlp_reference(x, params):
    """Layer-by-layer reference == module forward in eval mode."""
    h = x
    for (w, b) in params:
        h = h @ w + b
    return h


# ------------------------------ demo --------------------------------------- #
if __name__ == "__main__":
    key = jax.random.PRNGKey(0)
    key, kx = jax.random.split(key)

    batch = 64           # small demo shape; tile picker -> 32-row tiles, 2 steps
    input_size = 768     # CLIP ViT-L/14 embedding size used by the scorer

    x = jax.random.normal(kx, (batch, input_size), jnp.float32)
    params = init_params(key, input_size)

    forward = make_mlp_forward(params)          # fold + jit once
    out = jax.block_until_ready(forward(x))

    ref = mlp_reference(x, params)
    assert out.shape == (batch, 1), out.shape
    assert jnp.allclose(out, ref, atol=5e-4, rtol=5e-4), \
        f"max err {jnp.max(jnp.abs(out - ref))}"

    print("KERNEL_OK")
</pallas_src>

<mosaic_0001>
module attributes {stable_mosaic.version = 11 : i64} {
  func.func @affine_kernel(%arg0: i32, %arg1: memref<32x768xf32, #tpu.memory_space<vmem>>, %arg2: memref<768x1xf32, #tpu.memory_space<vmem>>, %arg3: memref<1x1xf32, #tpu.memory_space<smem>>, %arg4: memref<32x1xf32, #tpu.memory_space<vmem>>) attributes {dimension_semantics = [#tpu.dimension_semantics<parallel>], iteration_bounds = array<i64: 2>, scalar_prefetch = 0 : i64, scratch_operands = 0 : i64, tpu.core_type = #tpu.core_type<tc>, window_params = [{transform_indices = @transform_0, window_bounds = array<i64: 32, 768>}, {pipeline_mode = #tpu.pipeline_mode<synchronous>, transform_indices = @transform_1, window_bounds = array<i64: 768, 1>}, {transform_indices = @transform_2, window_bounds = array<i64: 1, 1>}, {transform_indices = @transform_3, window_bounds = array<i64: 32, 1>}]} {
    %c0 = arith.constant 0 : index
    %c0_0 = arith.constant 0 : index
    %0 = vector.load %arg1[%c0, %c0_0] : memref<32x768xf32, #tpu.memory_space<vmem>>, vector<32x768xf32>
    %c0_1 = arith.constant 0 : index
    %c0_2 = arith.constant 0 : index
    %1 = vector.load %arg2[%c0_1, %c0_2] : memref<768x1xf32, #tpu.memory_space<vmem>>, vector<768x1xf32>
    %cst = arith.constant dense<0.000000e+00> : vector<32x1xf32>
    %2 = tpu.matmul %0, %1, %cst {dimension_numbers = #tpu.dot_dimension_numbers<[1], [0], [0], [1], [0, 0, 1, 1], [], []>} : vector<32x768xf32>, vector<768x1xf32>, vector<32x1xf32> -> vector<32x1xf32>
    %c0_3 = arith.constant 0 : index
    %c0_4 = arith.constant 0 : index
    %3 = memref.load %arg3[%c0_3, %c0_4] : memref<1x1xf32, #tpu.memory_space<smem>>
    %4 = vector.broadcast %3 : f32 to vector<32x1xf32>
    %5 = arith.addf %2, %4 : vector<32x1xf32>
    %c0_5 = arith.constant 0 : index
    %c0_6 = arith.constant 0 : index
    %6 = vector.load %arg4[%c0_5, %c0_6] : memref<32x1xf32, #tpu.memory_space<vmem>>, vector<32x1xf32>
    tpu.vector_store %arg4[%c0_5, %c0_6], %5 {strides = array<i32>} : memref<32x1xf32, #tpu.memory_space<vmem>>, vector<32x1xf32>,
    return
  }
  func.func @transform_0(%arg0: i32) -> (i32, i32) {
    %c0_i32 = arith.constant 0 : i32
    %c0_i32_0 = arith.constant 0 : i32
    return %arg0, %c0_i32 : i32, i32
  }
  func.func @transform_1(%arg0: i32) -> (i32, i32) {
    %c0_i32 = arith.constant 0 : i32
    %c0_i32_0 = arith.constant 0 : i32
    %c0_i32_1 = arith.constant 0 : i32
    return %c0_i32, %c0_i32_0 : i32, i32
  }
  func.func @transform_2(%arg0: i32) -> (i32, i32) {
    %c0_i32 = arith.constant 0 : i32
    %c0_i32_0 = arith.constant 0 : i32
    %c0_i32_1 = arith.constant 0 : i32
    return %c0_i32, %c0_i32_0 : i32, i32
  }
  func.func @transform_3(%arg0: i32) -> (i32, i32) {
    %c0_i32 = arith.constant 0 : i32
    %c0_i32_0 = arith.constant 0 : i32
    return %arg0, %c0_i32 : i32, i32
  }
}

</mosaic_0001>

<llo_original>
// kernel: forward.1
$region0: #{forward.1}
  #allocation0 [shape = 'u32[]', space=smem, size = 0x4, offset = 0x4, fixed_abs, tag = 'smem constant byte address 0x4 - core index']
  #allocation1 [shape = 'u32[144,128]{1,0:T(1,128)}', space=vmem, size = 0x12000, scoped, tag = 'internal scratch']
  #allocation2 [shape = 'f32[1,1]{1,0:T(1,128)S(6)}', space=smem, size = 0x200, scoped, tag = 'scoped memory for forward.1']
  %s0 = inlined_call_operand.hbm [shape: f32[64,768], index: 0, kind: input, shape index: {}]
  %s1 = inlined_call_operand.hbm [shape: f32[768,1], index: 1, kind: input, shape index: {}]
  %s2 = inlined_call_operand.<no memory space> [shape: f32[1,1], index: 2, kind: input, shape index: {}]
  %s3 = inlined_call_operand.vmem [shape: f32[64,1], index: 3, kind: output, shape index: {}]
  %s4 = sld [smem:[#allocation0]]
  $region53: #{forward.1} parent=0
    _
  %s6 = ssub.s32 1, %s4
  %s7 = scalar_select 0, %s6, %s4
  %8 = sst [smem:[#allocation2]] %s2
  $region1: #{forward.1} parent=0
    #allocation3 [shape = 'u8[196608]{0}', space=vmem, size = 0x30000, scoped, tag = 'input window, operand 0']
    #allocation4 [shape = 's32[2]{0}', space=sflag, size = 0x8, scoped, tag = 'scoped memory for forward.1']
    #allocation5 [shape = 'u8[393216]{0}', space=vmem, size = 0x60000, scoped, tag = 'input window, operand 1, single buffered']
    #allocation6 [shape = 's32[1]{0}', space=sflag, size = 0x4, scoped, tag = 'scoped memory for forward.1']
    %9 = vsyncpa [#allocation4], 0
    %s10 = scalar_lea.sflag [#allocation4], 1
    %11 = vsyncpa %s10, 0
    %12 = vsyncpa [#allocation6], 0
    loop: start=0, step=1, limit=4
    $region2: #{forward.1} parent=1 // loop_pre_header
      _
    $region3: #{forward.1} parent=1 // loop_header
      %s14 = sphi 0, %s18
      %p15 = scmp.ge.s32.totalorder %s14, 4
      %s24 = sphi 0, %s26
      %s27 = sphi 0, %s24
      %s28 = sphi 0, %s27
      %s44 = sphi 0, %s28
      %s48 = sphi 0, %s48
      %s50 = sphi 0, %s48
      %s51 = sphi 0, %s50
      %s65 = sphi 0, %s51
      %s69 = sphi 0, %s69
      %s71 = sphi 0, %s69
      %s72 = sphi 0, %s71
      %s86 = sphi 0, %s72
      %s92 = sphi 0, %s94
      %s95 = sphi 0, %s92
      %s96 = sphi 0, %s95
      %s112 = sphi 0, %s96
    $region4: #{forward.1} parent=1 // loop_header_branch
      %17 = sbr.rel (%p15) target = $region8
    $region5: #{forward.1} parent=1 // loop_body
      %s19 = ssub.s32 %s14, 1
      %s20 = ssub.s32 %s14, 2
      %s21 = sadd.s32 %s14, 1
      %s22 = ssub.s32 %s14, %s21
      %p23 = scmp.eq.s32.totalorder %s22, 0
      %s25 = sadd.s32 %s24, 1
      %s26 = scalar_select %p23, %s24, %s25
      %p29 = pneg %p23
      %p30 = scmp.eq.s32.totalorder %s14, 1
      %p31 = por %p29, %p30
      %p32 = scmp.ne.s32.totalorder %s24, %s27
      %p33 = scmp.eq.s32.totalorder %s14, 0
      %p34 = por %p32, %p33
      %p35 = scmp.ne.s32.totalorder %s24, %s27
      %p36 = scmp.eq.s32.totalorder %s19, 1
      %p37 = por %p35, %p36
      %p38 = scmp.ne.s32.totalorder %s27, %s28
      %p39 = scmp.eq.s32.totalorder %s19, 0
      %p40 = por %p38, %p39
      %p41 = scmp.ne.s32.totalorder %s27, %s28
      %p42 = scmp.eq.s32.totalorder %s20, 1
      %p43 = por %p41, %p42
      %p45 = scmp.ne.s32.totalorder %s28, %s44
      %p46 = scmp.eq.s32.totalorder %s20, 0
      %p47 = por %p45, %p46
      %s49 = sadd.s32 %s48, 1
      %p52 = scmp.eq.s32.totalorder %s14, 1
      %p53 = scmp.ne.s32.totalorder %s48, %s50
      %p54 = scmp.eq.s32.totalorder %s14, 0
      %p55 = por %p53, %p54
      %p56 = scmp.ne.s32.totalorder %s48, %s50
      %p57 = scmp.eq.s32.totalorder %s19, 1
      %p58 = por %p56, %p57
      %p59 = scmp.ne.s32.totalorder %s50, %s51
      %p60 = scmp.eq.s32.totalorder %s19, 0
      %p61 = por %p59, %p60
      %p62 = scmp.ne.s32.totalorder %s50, %s51
      %p63 = scmp.eq.s32.totalorder %s20, 1
      %p64 = por %p62, %p63
      %p66 = scmp.ne.s32.totalorder %s51, %s65
      %p67 = scmp.eq.s32.totalorder %s20, 0
      %p68 = por %p66, %p67
      %s70 = sadd.s32 %s69, 1
      %p73 = scmp.eq.s32.totalorder %s14, 1
      %p74 = scmp.ne.s32.totalorder %s69, %s71
      %p75 = scmp.eq.s32.totalorder %s14, 0
      %p76 = por %p74, %p75
      %p77 = scmp.ne.s32.totalorder %s69, %s71
      %p78 = scmp.eq.s32.totalorder %s19, 1
      %p79 = por %p77, %p78
      %p80 = scmp.ne.s32.totalorder %s71, %s72
      %p81 = scmp.eq.s32.totalorder %s19, 0
      %p82 = por %p80, %p81
      %p83 = scmp.ne.s32.totalorder %s71, %s72
      %p84 = scmp.eq.s32.totalorder %s20, 1
      %p85 = por %p83, %p84
      %p87 = scmp.ne.s32.totalorder %s72, %s86
      %p88 = scmp.eq.s32.totalorder %s20, 0
      %p89 = por %p87, %p88
      %s90 = ssub.s32 %s14, %s21
      %p91 = scmp.eq.s32.totalorder %s90, 0
      %s93 = sadd.s32 %s92, 1
      %s94 = scalar_select %p91, %s92, %s93
      %p97 = pneg %p91
      %p98 = scmp.eq.s32.totalorder %s14, 1
      %p99 = por %p97, %p98
      %p100 = scmp.ne.s32.totalorder %s92, %s95
      %p101 = scmp.eq.s32.totalorder %s14, 0
      %p102 = por %p100, %p101
      %p103 = scmp.ne.s32.totalorder %s92, %s95
      %p104 = scmp.eq.s32.totalorder %s19, 1
      %p105 = por %p103, %p104
      %p106 = scmp.ne.s32.totalorder %s95, %s96
      %p107 = scmp.eq.s32.totalorder %s19, 0
      %p108 = por %p106, %p107
      %p109 = scmp.ne.s32.totalorder %s95, %s96
      %p110 = scmp.eq.s32.totalorder %s20, 1
      %p111 = por %p109, %p110
      %p113 = scmp.ne.s32.totalorder %s96, %s112
      %p114 = scmp.eq.s32.totalorder %s20, 0
      %p115 = por %p113, %p114
      %p116 = scmp.le.s32.totalorder 1, %s14
      %p117 = scmp.lt.s32.totalorder %s14, 3
      %p118 = pnand %p116, %p117
      %p119 = pneg %p118
      // Predicated region
      $region9: #{forward.1} parent=5 // pred_check
        _
      $region10: #{forward.1} parent=5 // pred_check_branch
        %121 = sbr.rel (%p118) target = $region12
      $region11: #{forward.1} parent=5 // pred_region
        %s122 = ssub.s32 %s14, 1
        // Predicated region
        $region13: #{forward.1} parent=11 // pred_check
          %p123 = pneg %p61
        $region14: #{forward.1} parent=11 // pred_check_branch
          %125 = sbr.rel (%p123) target = $region16
        $region15: #{forward.1} parent=11 // pred_region
          %s127 = ssub.s32 12288, 12288
          %128 = vsyncadd [#allocation6], %s127
          %s129 = sshll.u32 [#allocation5], 4
          %s130 = int_to_ptr.vmem [resolvable:$true] %s129
          %135 = dma.hbm_to_vmem [thread:$0]  %s1, 12288, %s130, [#allocation6], 128, 128, 8
        $region16: #{forward.1} parent=11 // pred_fallthru
          _
        // Predicated region
        $region17: #{forward.1} parent=11 // pred_check
          %p136 = pneg %p82
        $region18: #{forward.1} parent=11 // pred_check_branch
          %138 = sbr.rel (%p136) target = $region20
        $region19: #{forward.1} parent=11 // pred_region
          _
        $region20: #{forward.1} parent=11 // pred_fallthru
          _
      $region12: #{forward.1} parent=5 // pred_fallthru
        _
      %p139 = scmp.lt.s32.totalorder %s14, 2
      // Predicated region
      $region21: #{forward.1} parent=5 // pred_check
        %p140 = pneg %p139
      $region22: #{forward.1} parent=5 // pred_check_branch
        %142 = sbr.rel (%p140) target = $region24
      $region23: #{forward.1} parent=5 // pred_region
        // Predicated region
        $region25: #{forward.1} parent=23 // pred_check
          %p143 = pneg %p34
        $region26: #{forward.1} parent=23 // pred_check_branch
          %145 = sbr.rel (%p143) target = $region28
        $region27: #{forward.1} parent=23 // pred_region
          %s146 = sand.u32 %s24, 1
          %s147 = scalar_lea.sflag [#allocation4], %s146
          %s148 = sand.u32 %s24, 1
          %s149 = smul.addr %s148, 192
          %s150 = scalar_lea.vmem [#allocation3], %s149
          %s151 = smul.u32 4, %s14
          %s153 = ssub.s32 3072, 3072
          %154 = vsyncadd %s147, %s153
          %s155 = smul.addr %s151, 6
          %s156 = smul.addr %s155, 128
          %s157 = scalar_lea.hbm %s0, %s156
          %s158 = sshll.u32 %s150, 4
          %s159 = int_to_ptr.vmem [resolvable:$true] %s158
          %164 = dma.hbm_to_vmem [thread:$0]  %s157, 3072, %s159, %s147, 768, 768, 48
        $region28: #{forward.1} parent=23 // pred_fallthru
          _
      $region24: #{forward.1} parent=5 // pred_fallthru
        _
      %p165 = scmp.le.s32.totalorder 1, %s14
      %p166 = scmp.lt.s32.totalorder %s14, 3
      %p167 = pnand %p165, %p166
      %p168 = pneg %p167
      // Predicated region
      $region29: #{forward.1} parent=5 // pred_check
        _
      $region30: #{forward.1} parent=5 // pred_check_branch
        %170 = sbr.rel (%p167) target = $region32
      $region31: #{forward.1} parent=5 // pred_region
        %s171 = ssub.s32 %s14, 1
        %s172 = sand.u32 %s27, 1
        %s173 = scalar_lea.sflag [#allocation4], %s172
        %s174 = sand.u32 %s27, 1
        %s175 = smul.addr %s174, 192
        %s176 = scalar_lea.vmem [#allocation3], %s175
        // Predicated region
        $region33: #{forward.1} parent=31 // pred_check
          %p177 = pneg %p40
        $region34: #{forward.1} parent=31 // pred_check_branch
          %179 = sbr.rel (%p177) target = $region36
        $region35: #{forward.1} parent=31 // pred_region
          %180 = dma.done %s173, 3072
        $region36: #{forward.1} parent=31 // pred_fallthru
          _
        // Predicated region
        $region37: #{forward.1} parent=31 // pred_check
          %p181 = pneg %p61
        $region38: #{forward.1} parent=31 // pred_check_branch
          %183 = sbr.rel (%p181) target = $region40
        $region39: #{forward.1} parent=31 // pred_region
          %184 = dma.done [#allocation6], 12288
        $region40: #{forward.1} parent=31 // pred_fallthru
          _
        %s185 = sand.u32 %s27, 1
        %s186 = scalar_lea.sflag [#allocation4], %s185
        %s187 = sand.u32 %s27, 1
        %s188 = smul.addr %s187, 192
        %s189 = scalar_lea.vmem [#allocation3], %s188
        %p190 = pneg %p40
        %p191 = pneg %p37
        %p192 = pneg %p61
        %p193 = pneg %p58
        %p194 = pneg %p82
        %p195 = pneg %p79
        %p196 = pneg %p108
        %p197 = pneg %p105
        %s198 = smul.u32 4, %s19
        %p199 = scmp.lt.s32.totalorder %s198, 7
        %s200 = scalar_select %p199, %s198, 7
        %s201 = smul.addr %s200, 8
        %s202 = scalar_lea.vmem %s3, %s201
        %s203 = smul.u32 4, %s19
        %s204 = smul.u32 4, %s19
        %p205 = scmp.lt.s32.totalorder %s204, 7
        %s206 = scalar_select %p205, %s204, 7
        %s207 = smul.addr %s206, 8
        %s208 = scalar_lea.vmem %s3, %s207
        %s209 = smul.u32 4, %s19
        %v210 = vld [vmem:[%s176] sm:$0xff]
        %v211 = vld [vmem:[%s176 + $0x8] sm:$0xff]
        %v212 = vld [vmem:[%s176 + $0x10] sm:$0xff]
        %v213 = vld [vmem:[%s176 + $0x18] sm:$0xff]
        %v214 = vld [vmem:[%s176 + $0x20] sm:$0xff]
        %v215 = vld [vmem:[%s176 + $0x28] sm:$0xff]
        %v216 = vld [vmem:[%s176 + $0x30] sm:$0xff]
        %v217 = vld [vmem:[%s176 + $0x38] sm:$0xff]
        %v218 = vld [vmem:[%s176 + $0x40] sm:$0xff]
        %v219 = vld [vmem:[%s176 + $0x48] sm:$0xff]
        %v220 = vld [vmem:[%s176 + $0x50] sm:$0xff]
        %v221 = vld [vmem:[%s176 + $0x58] sm:$0xff]
        %v222 = vld [vmem:[%s176 + $0x60] sm:$0xff]
        %v223 = vld [vmem:[%s176 + $0x68] sm:$0xff]
        %v224 = vld [vmem:[%s176 + $0x70] sm:$0xff]
        %v225 = vld [vmem:[%s176 + $0x78] sm:$0xff]
        %v226 = vld [vmem:[%s176 + $0x80] sm:$0xff]
        %v227 = vld [vmem:[%s176 + $0x88] sm:$0xff]
        %v228 = vld [vmem:[%s176 + $0x90] sm:$0xff]
        %v229 = vld [vmem:[%s176 + $0x98] sm:$0xff]
        %v230 = vld [vmem:[%s176 + $0xa0] sm:$0xff]
        %v231 = vld [vmem:[%s176 + $0xa8] sm:$0xff]
        %v232 = vld [vmem:[%s176 + $0xb0] sm:$0xff]
        %v233 = vld [vmem:[%s176 + $0xb8] sm:$0xff]
        %v234 = vld [vmem:[#allocation5] sm:$0xff]
        %v235 = vld [vmem:[#allocation5 + $0x8] sm:$0xff]
        %v236 = vld [vmem:[#allocation5 + $0x10] sm:$0xff]
        %v237 = vld [vmem:[#allocation5 + $0x18] sm:$0xff]
        %v238 = vld [vmem:[#allocation5 + $0x20] sm:$0xff]
        %v239 = vld [vmem:[#allocation5 + $0x28] sm:$0xff]
        %v240 = vld [vmem:[#allocation5 + $0x30] sm:$0xff]
        %v241 = vld [vmem:[#allocation5 + $0x38] sm:$0xff]
        %v242 = vld [vmem:[#allocation5 + $0x40] sm:$0xff]
        %v243 = vld [vmem:[#allocation5 + $0x48] sm:$0xff]
        %v244 = vld [vmem:[#allocation5 + $0x50] sm:$0xff]
        %v245 = vld [vmem:[#allocation5 + $0x58] sm:$0xff]
        %v246 = vld [vmem:[#allocation5 + $0x60] sm:$0xff]
        %v247 = vld [vmem:[#allocation5 + $0x68] sm:$0xff]
        %v248 = vld [vmem:[#allocation5 + $0x70] sm:$0xff]
        %v249 = vld [vmem:[#allocation5 + $0x78] sm:$0xff]
        %v250 = vld [vmem:[#allocation5 + $0x80] sm:$0xff]
        %v251 = vld [vmem:[#allocation5 + $0x88] sm:$0xff]
        %v252 = vld [vmem:[#allocation5 + $0x90] sm:$0xff]
        %v253 = vld [vmem:[#allocation5 + $0x98] sm:$0xff]
        %v254 = vld [vmem:[#allocation5 + $0xa0] sm:$0xff]
        %v255 = vld [vmem:[#allocation5 + $0xa8] sm:$0xff]
        %v256 = vld [vmem:[#allocation5 + $0xb0] sm:$0xff]
        %v257 = vld [vmem:[#allocation5 + $0xb8] sm:$0xff]
        %v258 = vld [vmem:[#allocation5 + $0xc0] sm:$0xff]
        %v259 = vld [vmem:[#allocation5 + $0xc8] sm:$0xff]
        %v260 = vld [vmem:[#allocation5 + $0xd0] sm:$0xff]
        %v261 = vld [vmem:[#allocation5 + $0xd8] sm:$0xff]
        %v262 = vld [vmem:[#allocation5 + $0xe0] sm:$0xff]
        %v263 = vld [vmem:[#allocation5 + $0xe8] sm:$0xff]
        %v264 = vld [vmem:[#allocation5 + $0xf0] sm:$0xff]
        %v265 = vld [vmem:[#allocation5 + $0xf8] sm:$0xff]
        %v266 = vld [vmem:[#allocation5 + $0x100] sm:$0xff]
        %v267 = vld [vmem:[#allocation5 + $0x108] sm:$0xff]
        %v268 = vld [vmem:[#allocation5 + $0x110] sm:$0xff]
        %v269 = vld [vmem:[#allocation5 + $0x118] sm:$0xff]
        %v270 = vld [vmem:[#allocation5 + $0x120] sm:$0xff]
        %v271 = vld [vmem:[#allocation5 + $0x128] sm:$0xff]
        %v272 = vld [vmem:[#allocation5 + $0x130] sm:$0xff]
        %v273 = vld [vmem:[#allocation5 + $0x138] sm:$0xff]
        %v274 = vld [vmem:[#allocation5 + $0x140] sm:$0xff]
        %v275 = vld [vmem:[#allocation5 + $0x148] sm:$0xff]
        %v276 = vld [vmem:[#allocation5 + $0x150] sm:$0xff]
        %v277 = vld [vmem:[#allocation5 + $0x158] sm:$0xff]
        %v278 = vld [vmem:[#allocation5 + $0x160] sm:$0xff]
        %v279 = vld [vmem:[#allocation5 + $0x168] sm:$0xff]
        %v280 = vld [vmem:[#allocation5 + $0x170] sm:$0xff]
        %v281 = vld [vmem:[#allocation5 + $0x178] sm:$0xff]
        %v282 = vld [vmem:[#allocation5 + $0x180] sm:$0xff]
        %v283 = vld [vmem:[#allocation5 + $0x188] sm:$0xff]
        %v284 = vld [vmem:[#allocation5 + $0x190] sm:$0xff]
        %v285 = vld [vmem:[#allocation5 + $0x198] sm:$0xff]
        %v286 = vld [vmem:[#allocation5 + $0x1a0] sm:$0xff]
        %v287 = vld [vmem:[#allocation5 + $0x1a8] sm:$0xff]
        %v288 = vld [vmem:[#allocation5 + $0x1b0] sm:$0xff]
        %v289 = vld [vmem:[#allocation5 + $0x1b8] sm:$0xff]
        %v290 = vld [vmem:[#allocation5 + $0x1c0] sm:$0xff]
        %v291 = vld [vmem:[#allocation5 + $0x1c8] sm:$0xff]
        %v292 = vld [vmem:[#allocation5 + $0x1d0] sm:$0xff]
        %v293 = vld [vmem:[#allocation5 + $0x1d8] sm:$0xff]
        %v294 = vld [vmem:[#allocation5 + $0x1e0] sm:$0xff]
        %v295 = vld [vmem:[#allocation5 + $0x1e8] sm:$0xff]
        %v296 = vld [vmem:[#allocation5 + $0x1f0] sm:$0xff]
        %v297 = vld [vmem:[#allocation5 + $0x1f8] sm:$0xff]
        %v298 = vld [vmem:[#allocation5 + $0x200] sm:$0xff]
        %v299 = vld [vmem:[#allocation5 + $0x208] sm:$0xff]
        %v300 = vld [vmem:[#allocation5 + $0x210] sm:$0xff]
        %v301 = vld [vmem:[#allocation5 + $0x218] sm:$0xff]
        %v302 = vld [vmem:[#allocation5 + $0x220] sm:$0xff]
        %v303 = vld [vmem:[#allocation5 + $0x228] sm:$0xff]
        %v304 = vld [vmem:[#allocation5 + $0x230] sm:$0xff]
        %v305 = vld [vmem:[#allocation5 + $0x238] sm:$0xff]
        %v306 = vld [vmem:[#allocation5 + $0x240] sm:$0xff]
        %v307 = vld [vmem:[#allocation5 + $0x248] sm:$0xff]
        %v308 = vld [vmem:[#allocation5 + $0x250] sm:$0xff]
        %v309 = vld [vmem:[#allocation5 + $0x258] sm:$0xff]
        %v310 = vld [vmem:[#allocation5 + $0x260] sm:$0xff]
        %v311 = vld [vmem:[#allocation5 + $0x268] sm:$0xff]
        %v312 = vld [vmem:[#allocation5 + $0x270] sm:$0xff]
        %v313 = vld [vmem:[#allocation5 + $0x278] sm:$0xff]
        %v314 = vld [vmem:[#allocation5 + $0x280] sm:$0xff]
        %v315 = vld [vmem:[#allocation5 + $0x288] sm:$0xff]
        %v316 = vld [vmem:[#allocation5 + $0x290] sm:$0xff]
        %v317 = vld [vmem:[#allocation5 + $0x298] sm:$0xff]
        %v318 = vld [vmem:[#allocation5 + $0x2a0] sm:$0xff]
        %v319 = vld [vmem:[#allocation5 + $0x2a8] sm:$0xff]
        %v320 = vld [vmem:[#allocation5 + $0x2b0] sm:$0xff]
        %v321 = vld [vmem:[#allocation5 + $0x2b8] sm:$0xff]
        %v322 = vld [vmem:[#allocation5 + $0x2c0] sm:$0xff]
        %v323 = vld [vmem:[#allocation5 + $0x2c8] sm:$0xff]
        %v324 = vld [vmem:[#allocation5 + $0x2d0] sm:$0xff]
        %v325 = vld [vmem:[#allocation5 + $0x2d8] sm:$0xff]
        %v326 = vld [vmem:[#allocation5 + $0x2e0] sm:$0xff]
        %v327 = vld [vmem:[#allocation5 + $0x2e8] sm:$0xff]
        %v328 = vld [vmem:[#allocation5 + $0x2f0] sm:$0xff]
        %v329 = vld [vmem:[#allocation5 + $0x2f8] sm:$0xff]
        %s330 = sld [smem:[#allocation2]]
        %v331 = vstv %s330
        %332 = vmatprep.subr.mxu0 0.0
        %333 = vmatpush1.msra.mxu0 %v249
        %334 = vmatprep.subr.mxu0 0.0
        %335 = vmatpush1.msra.mxu0 %v248
        %336 = vmatprep.subr.mxu0 0.0
        %337 = vmatpush1.msra.mxu0 %v247
        %338 = vmatprep.subr.mxu0 0.0
        %339 = vmatpush1.msra.mxu0 %v246
        %340 = vmatprep.subr.mxu0 0.0
        %341 = vmatpush1.msra.mxu0 %v245
        %342 = vmatprep.subr.mxu0 0.0
        %343 = vmatpush1.msra.mxu0 %v244
        %344 = vmatprep.subr.mxu0 0.0
        %345 = vmatpush1.msra.mxu0 %v243
        %346 = vmatprep.subr.mxu0 0.0
        %347 = vmatpush1.msra.mxu0 %v242
        %348 = vmatprep.subr.mxu0 0.0
        %349 = vmatpush1.msra.mxu0 %v241
        %350 = vmatprep.subr.mxu0 0.0
        %351 = vmatpush1.msra.mxu0 %v240
        %352 = vmatprep.subr.mxu0 0.0
        %353 = vmatpush1.msra.mxu0 %v239
        %354 = vmatprep.subr.mxu0 0.0
        %355 = vmatpush1.msra.mxu0 %v238
        %356 = vmatprep.subr.mxu0 0.0
        %357 = vmatpush1.msra.mxu0 %v237
        %358 = vmatprep.subr.mxu0 0.0
        %359 = vmatpush1.msra.mxu0 %v236
        %360 = vmatprep.subr.mxu0 0.0
        %361 = vmatpush1.msra.mxu0 %v235
        %362 = vmatprep.subr.mxu0 0.0
        %363 = vmatpush1.msra.mxu0 %v234
        %364 = vmatprep.subr.mxu0 0.0
        %365 = vmatpush2.msra.mxu0 %v265
        %366 = vmatprep.subr.mxu0 0.0
        %367 = vmatpush2.msra.mxu0 %v264
        %368 = vmatprep.subr.mxu0 0.0
        %369 = vmatpush2.msra.mxu0 %v263
        %370 = vmatprep.subr.mxu0 0.0
        %371 = vmatpush2.msra.mxu0 %v262
        %372 = vmatprep.subr.mxu0 0.0
        %373 = vmatpush2.msra.mxu0 %v261
        %374 = vmatprep.subr.mxu0 0.0
        %375 = vmatpush2.msra.mxu0 %v260
        %376 = vmatprep.subr.mxu0 0.0
        %377 = vmatpush2.msra.mxu0 %v259
        %378 = vmatprep.subr.mxu0 0.0
        %379 = vmatpush2.msra.mxu0 %v258
        %380 = vmatprep.subr.mxu0 0.0
        %381 = vmatpush2.msra.mxu0 %v257
        %382 = vmatprep.subr.mxu0 0.0
        %383 = vmatpush2.msra.mxu0 %v256
        %384 = vmatprep.subr.mxu0 0.0
        %385 = vmatpush2.msra.mxu0 %v255
        %386 = vmatprep.subr.mxu0 0.0
        %387 = vmatpush2.msra.mxu0 %v254
        %388 = vmatprep.subr.mxu0 0.0
        %389 = vmatpush2.msra.mxu0 %v253
        %390 = vmatprep.subr.mxu0 0.0
        %391 = vmatpush2.msra.mxu0 %v252
        %392 = vmatprep.subr.mxu0 0.0
        %393 = vmatpush2.msra.mxu0 %v251
        %394 = vmatprep.subr.mxu0 0.0
        %395 = vmatpush2.msra.mxu0 %v250
        %396 = vmatprep.mubr.f32.mxu0 %v211
        %397 = vmatmul.mubr.f32.gmra.mxu0 %v210
        %v398 = vpop.f32.mrf.mxu0
        %v399 = vadd.f32 %v331, %v398
        %v400 = vpop.f32.mrf.mxu0
        %401 = vmatprep.mubr.f32.mxu0 %v217
        %402 = vmatmul.mubr.f32.gmra.mxu0 %v216
        %v403 = vpop.f32.mrf.mxu0
        %v404 = vadd.f32 %v331, %v403
        %v405 = vpop.f32.mrf.mxu0
        %406 = vmatprep.mubr.f32.mxu0 %v223
        %407 = vmatmul.mubr.f32.gmra.mxu0 %v222
        %v408 = vpop.f32.mrf.mxu0
        %v409 = vadd.f32 %v331, %v408
        %v410 = vpop.f32.mrf.mxu0
        %411 = vmatprep.mubr.f32.mxu0 %v229
        %412 = vmatmul.mubr.f32.gmra.mxu0 %v228
        %v413 = vpop.f32.mrf.mxu0
        %v414 = vadd.f32 %v331, %v413
        %v415 = vpop.f32.mrf.mxu0
        %416 = vdwg.mxu0
        %417 = vmatprep.subr.mxu0 0.0
        %418 = vmatpush1.msra.mxu0 %v281
        %419 = vmatprep.subr.mxu0 0.0
        %420 = vmatpush1.msra.mxu0 %v280
        %421 = vmatprep.subr.mxu0 0.0
        %422 = vmatpush1.msra.mxu0 %v279
        %423 = vmatprep.subr.mxu0 0.0
        %424 = vmatpush1.msra.mxu0 %v278
        %425 = vmatprep.subr.mxu0 0.0
        %426 = vmatpush1.msra.mxu0 %v277
        %427 = vmatprep.subr.mxu0 0.0
        %428 = vmatpush1.msra.mxu0 %v276
        %429 = vmatprep.subr.mxu0 0.0
        %430 = vmatpush1.msra.mxu0 %v275
        %431 = vmatprep.subr.mxu0 0.0
        %432 = vmatpush1.msra.mxu0 %v274
        %433 = vmatprep.subr.mxu0 0.0
        %434 = vmatpush1.msra.mxu0 %v273
        %435 = vmatprep.subr.mxu0 0.0
        %436 = vmatpush1.msra.mxu0 %v272
        %437 = vmatprep.subr.mxu0 0.0
        %438 = vmatpush1.msra.mxu0 %v271
        %439 = vmatprep.subr.mxu0 0.0
        %440 = vmatpush1.msra.mxu0 %v270
        %441 = vmatprep.subr.mxu0 0.0
        %442 = vmatpush1.msra.mxu0 %v269
        %443 = vmatprep.subr.mxu0 0.0
        %444 = vmatpush1.msra.mxu0 %v268
        %445 = vmatprep.subr.mxu0 0.0
        %446 = vmatpush1.msra.mxu0 %v267
        %447 = vmatprep.subr.mxu0 0.0
        %448 = vmatpush1.msra.mxu0 %v266
        %449 = vmatprep.subr.mxu0 0.0
        %450 = vmatpush2.msra.mxu0 %v297
        %451 = vmatprep.subr.mxu0 0.0
        %452 = vmatpush2.msra.mxu0 %v296
        %453 = vmatprep.subr.mxu0 0.0
        %454 = vmatpush2.msra.mxu0 %v295
        %455 = vmatprep.subr.mxu0 0.0
        %456 = vmatpush2.msra.mxu0 %v294
        %457 = vmatprep.subr.mxu0 0.0
        %458 = vmatpush2.msra.mxu0 %v293
        %459 = vmatprep.subr.mxu0 0.0
        %460 = vmatpush2.msra.mxu0 %v292
        %461 = vmatprep.subr.mxu0 0.0
        %462 = vmatpush2.msra.mxu0 %v291
        %463 = vmatprep.subr.mxu0 0.0
        %464 = vmatpush2.msra.mxu0 %v290
        %465 = vmatprep.subr.mxu0 0.0
        %466 = vmatpush2.msra.mxu0 %v289
        %467 = vmatprep.subr.mxu0 0.0
        %468 = vmatpush2.msra.mxu0 %v288
        %469 = vmatprep.subr.mxu0 0.0
        %470 = vmatpush2.msra.mxu0 %v287
        %471 = vmatprep.subr.mxu0 0.0
        %472 = vmatpush2.msra.mxu0 %v286
        %473 = vmatprep.subr.mxu0 0.0
        %474 = vmatpush2.msra.mxu0 %v285
        %475 = vmatprep.subr.mxu0 0.0
        %476 = vmatpush2.msra.mxu0 %v284
        %477 = vmatprep.subr.mxu0 0.0
        %478 = vmatpush2.msra.mxu0 %v283
        %479 = vmatprep.subr.mxu0 0.0
        %480 = vmatpush2.msra.mxu0 %v282
        %481 = vmatprep.mubr.f32.mxu0 %v213
        %482 = vmatmul.mubr.f32.gmra.mxu0 %v212
        %v483 = vpop.f32.mrf.mxu0
        %v484 = vadd.f32 %v399, %v483
        %v485 = vpop.f32.mrf.mxu0
        %486 = vmatprep.mubr.f32.mxu0 %v219
        %487 = vmatmul.mubr.f32.gmra.mxu0 %v218
        %v488 = vpop.f32.mrf.mxu0
        %v489 = vadd.f32 %v404, %v488
        %v490 = vpop.f32.mrf.mxu0
        %491 = vmatprep.mubr.f32.mxu0 %v225
        %492 = vmatmul.mubr.f32.gmra.mxu0 %v224
        %v493 = vpop.f32.mrf.mxu0
        %v494 = vadd.f32 %v409, %v493
        %v495 = vpop.f32.mrf.mxu0
        %496 = vmatprep.mubr.f32.mxu0 %v231
        %497 = vmatmul.mubr.f32.gmra.mxu0 %v230
        %v498 = vpop.f32.mrf.mxu0
        %v499 = vadd.f32 %v414, %v498
        %v500 = vpop.f32.mrf.mxu0
        %501 = vdwg.mxu0
        %502 = vmatprep.subr.mxu0 0.0
        %503 = vmatpush1.msra.mxu0 %v313
        %504 = vmatprep.subr.mxu0 0.0
        %505 = vmatpush1.msra.mxu0 %v312
        %506 = vmatprep.subr.mxu0 0.0
        %507 = vmatpush1.msra.mxu0 %v311
        %508 = vmatprep.subr.mxu0 0.0
        %509 = vmatpush1.msra.mxu0 %v310
        %510 = vmatprep.subr.mxu0 0.0
        %511 = vmatpush1.msra.mxu0 %v309
        %512 = vmatprep.subr.mxu0 0.0
        %513 = vmatpush1.msra.mxu0 %v308
        %514 = vmatprep.subr.mxu0 0.0
        %515 = vmatpush1.msra.mxu0 %v307
        %516 = vmatprep.subr.mxu0 0.0
        %517 = vmatpush1.msra.mxu0 %v306
        %518 = vmatprep.subr.mxu0 0.0
        %519 = vmatpush1.msra.mxu0 %v305
        %520 = vmatprep.subr.mxu0 0.0
        %521 = vmatpush1.msra.mxu0 %v304
        %522 = vmatprep.subr.mxu0 0.0
        %523 = vmatpush1.msra.mxu0 %v303
        %524 = vmatprep.subr.mxu0 0.0
        %525 = vmatpush1.msra.mxu0 %v302
        %526 = vmatprep.subr.mxu0 0.0
        %527 = vmatpush1.msra.mxu0 %v301
        %528 = vmatprep.subr.mxu0 0.0
        %529 = vmatpush1.msra.mxu0 %v300
        %530 = vmatprep.subr.mxu0 0.0
        %531 = vmatpush1.msra.mxu0 %v299
        %532 = vmatprep.subr.mxu0 0.0
        %533 = vmatpush1.msra.mxu0 %v298
        %534 = vmatprep.subr.mxu0 0.0
        %535 = vmatpush2.msra.mxu0 %v329
        %536 = vmatprep.subr.mxu0 0.0
        %537 = vmatpush2.msra.mxu0 %v328
        %538 = vmatprep.subr.mxu0 0.0
        %539 = vmatpush2.msra.mxu0 %v327
        %540 = vmatprep.subr.mxu0 0.0
        %541 = vmatpush2.msra.mxu0 %v326
        %542 = vmatprep.subr.mxu0 0.0
        %543 = vmatpush2.msra.mxu0 %v325
        %544 = vmatprep.subr.mxu0 0.0
        %545 = vmatpush2.msra.mxu0 %v324
        %546 = vmatprep.subr.mxu0 0.0
        %547 = vmatpush2.msra.mxu0 %v323
        %548 = vmatprep.subr.mxu0 0.0
        %549 = vmatpush2.msra.mxu0 %v322
        %550 = vmatprep.subr.mxu0 0.0
        %551 = vmatpush2.msra.mxu0 %v321
        %552 = vmatprep.subr.mxu0 0.0
        %553 = vmatpush2.msra.mxu0 %v320
        %554 = vmatprep.subr.mxu0 0.0
        %555 = vmatpush2.msra.mxu0 %v319
        %556 = vmatprep.subr.mxu0 0.0
        %557 = vmatpush2.msra.mxu0 %v318
        %558 = vmatprep.subr.mxu0 0.0
        %559 = vmatpush2.msra.mxu0 %v317
        %560 = vmatprep.subr.mxu0 0.0
        %561 = vmatpush2.msra.mxu0 %v316
        %562 = vmatprep.subr.mxu0 0.0
        %563 = vmatpush2.msra.mxu0 %v315
        %564 = vmatprep.subr.mxu0 0.0
        %565 = vmatpush2.msra.mxu0 %v314
        %566 = vmatprep.mubr.f32.mxu0 %v215
        %567 = vmatmul.mubr.f32.gmra.mxu0 %v214
        %v568 = vpop.f32.mrf.mxu0
        %v569 = vadd.f32 %v484, %v568
        %v570 = vpop.f32.mrf.mxu0
        %571 = vmatprep.mubr.f32.mxu0 %v221
        %572 = vmatmul.mubr.f32.gmra.mxu0 %v220
        %v573 = vpop.f32.mrf.mxu0
        %v574 = vadd.f32 %v489, %v573
        %v575 = vpop.f32.mrf.mxu0
        %576 = vmatprep.mubr.f32.mxu0 %v227
        %577 = vmatmul.mubr.f32.gmra.mxu0 %v226
        %v578 = vpop.f32.mrf.mxu0
        %v579 = vadd.f32 %v494, %v578
        %v580 = vpop.f32.mrf.mxu0
        %581 = vmatprep.mubr.f32.mxu0 %v233
        %582 = vmatmul.mubr.f32.gmra.mxu0 %v232
        %v583 = vpop.f32.mrf.mxu0
        %v584 = vadd.f32 %v499, %v583
        %v585 = vpop.f32.mrf.mxu0
        %586 = vdwg.mxu0
        %vm587 = vcmask 7168
        %588 = vst.msk [vmem:[%s208] sm:$0xff] %vm587, %v569
        %589 = vst.msk [vmem:[%s208 + $0x8] sm:$0xff] %vm587, %v574
        %590 = vst.msk [vmem:[%s208 + $0x10] sm:$0xff] %vm587, %v579
        %591 = vst.msk [vmem:[%s208 + $0x18] sm:$0xff] %vm587, %v584
        %s592 = smul.u32 4, %s19
        %p593 = scmp.lt.s32.totalorder %s592, 7
        %s594 = scalar_select %p593, %s592, 7
        %s595 = smul.addr %s594, 8
        %s596 = scalar_lea.vmem %s3, %s595
        // Predicated region
        $region41: #{forward.1} parent=31 // pred_check
          %p597 = pneg %p105
        $region42: #{forward.1} parent=31 // pred_check_branch
          %599 = sbr.rel (%p597) target = $region44
        $region43: #{forward.1} parent=31 // pred_region
          %s600 = smul.u32 4, %s19
        $region44: #{forward.1} parent=31 // pred_fallthru
          _
      $region32: #{forward.1} parent=5 // pred_fallthru
        _
      %p601 = scmp.le.s32.totalorder 2, %s14
      // Predicated region
      $region45: #{forward.1} parent=5 // pred_check
        %p602 = pneg %p601
      $region46: #{forward.1} parent=5 // pred_check_branch
        %604 = sbr.rel (%p602) target = $region48
      $region47: #{forward.1} parent=5 // pred_region
        %s605 = ssub.s32 %s14, 2
        // Predicated region
        $region49: #{forward.1} parent=47 // pred_check
          %p606 = pneg %p111
        $region50: #{forward.1} parent=47 // pred_check_branch
          %608 = sbr.rel (%p606) target = $region52
        $region51: #{forward.1} parent=47 // pred_region
          %s609 = smul.u32 4, %s20
          %p610 = scmp.lt.s32.totalorder %s609, 7
          %s611 = scalar_select %p610, %s609, 7
          %s612 = smul.addr %s611, 8
          %s613 = scalar_lea.vmem %s3, %s612
        $region52: #{forward.1} parent=47 // pred_fallthru
          _
      $region48: #{forward.1} parent=5 // pred_fallthru
        _
    $region6: #{forward.1} parent=1 // loop_footer
      %s18 = sadd.s32 1, %s14
    $region7: #{forward.1} parent=1 // loop_footer_branch
      %13 = sbr.rel target = $region3
    $region8: #{forward.1} parent=1 // loop_exit
      _
    %614 = vsyncpa [#allocation4], 1
    %s615 = scalar_lea.sflag [#allocation4], 1
    %616 = vsyncpa %s615, 1
    %617 = vsyncpa [#allocation6], 1

</llo_original>
